<compile_context>
chip_gen: v7x
topology: tpu7x:2x2x1
jax: 0.10.0
libtpu: 0.0.40
codegen_flags: <defaults>
</compile_context>

<pallas_src>
import jax
import jax.numpy as jnp
import numpy as np
from jax.experimental import pallas as pl
from jax.experimental.pallas import tpu as pltpu

_LANE = 128


def _round_up(x, m):
    return (x + m - 1) // m * m


def _sim_kernel(ctx_ref, resp_ref, w1c_ref, w1r_ref, b1_ref, w2_ref, b2_ref,
                w3_ref, b3_ref, o_ref, h1ctx_ref):
    """Column-major MLP tile: features on sublanes, batch samples on lanes.

    Grid = (batch_tiles, n_resp); axis 1 (responses) iterates fastest.

    ctx_ref   : (TB, H)    bf16   context tile (same block for every response)
    resp_ref  : (TB, H)    bf16   response tile (leading resp dim squeezed)
    w1c_ref   : (H, H)     bf16   fc1.weight[:, :H]   (ctx half, resident)
    w1r_ref   : (H, H)     bf16   fc1.weight[:, H:]   (resp half, resident)
    b1_ref    : (H, 1)     f32
    w2_ref    : (H/2, H)   bf16
    b2_ref    : (H/2, 1)   f32
    w3_ref    : (H/2, 1)   f32    fc3.weight as a column (used on the VPU)
    b3_ref    : (1,)       f32    SMEM scalar
    o_ref     : (1, TB)    f32    sigmoid scores, lane-dense
    h1ctx_ref : (H, TB)    f32    VMEM scratch: cached ctx partial sum of fc1
    """
    # Contract on H (dim 1 of both operands); Mosaic handles the tile-local
    # transpose, so the wrapper never transposes the big resp tensor in HBM.
    dn = (((1,), (1,)), ((), ()))

    # ctx half of fc1: compute once per batch tile (first response only),
    # then reuse ("broadcast") across all responses of this tile.
    @pl.when(pl.program_id(1) == 0)
    def _():
        h1ctx_ref[...] = jax.lax.dot_general(
            w1c_ref[...], ctx_ref[...], dn,
            preferred_element_type=jnp.float32)                    # (H, TB)

    # resp half of fc1: bf16 MXU dot, f32 accumulation.
    h1_resp = jax.lax.dot_general(
        w1r_ref[...], resp_ref[...], dn,
        preferred_element_type=jnp.float32)                        # (H, TB)

    # fc1 bias + tanh in f32 (v5e VPU/EUP have no bf16).
    h1 = jnp.tanh(h1ctx_ref[...] + h1_resp + b1_ref[...])          # (H, TB)

    # fc2 + tanh: bf16 operands on the MXU, f32 accumulation.
    h2 = jnp.tanh(
        jnp.dot(w2_ref[...], h1.astype(jnp.bfloat16),
                preferred_element_type=jnp.float32)
        + b2_ref[...])                                             # (H/2, TB)

    # fc3 (+ sigmoid): output width 1 -> VPU multiply + sublane (XLU) reduce
    # instead of a degenerate MXU matmul.  b3 is an SMEM scalar.
    logits = jnp.sum(h2 * w3_ref[...], axis=0, keepdims=True) + b3_ref[0]
    o_ref[...] = jax.nn.sigmoid(logits)                            # (1, TB)


def similarity_forward(context_hidden, resp_hidden, params):
    """context_hidden: (1, B, H); resp_hidden: (N_RESP, B, H) -> score (N_RESP, B)."""
    w1, b1, w2, b2, w3, b3 = params          # PyTorch nn.Linear layouts (out, in)/(out,)
    n_resp, batch, hidden = resp_hidden.shape
    h2dim = w2.shape[0]

    # torch.squeeze equivalent, robust to B == 1 (explicit reshape).
    ctx = context_hidden.reshape(batch, hidden)                    # (B, H)

    # Lane-tile sizing: multiples of 128, capped at 512 (v5e prefers 128-wide
    # tiles; 256/512 fills the v6e/v7x 256-wide MXU -- all well inside the
    # 32 MiB scoped-VMEM default even at production H with double buffering).
    tb = min(512, _round_up(batch, _LANE))
    b_pad = _round_up(batch, tb)
    num_bt = b_pad // tb
    pad_b = b_pad - batch

    # bf16 MXU operands: halves HBM/DMA bytes, ~3x MXU throughput vs f32.
    ctx_p = jnp.pad(ctx, ((0, pad_b), (0, 0))).astype(jnp.bfloat16)
    resp_p = jnp.pad(resp_hidden, ((0, 0), (0, pad_b), (0, 0))).astype(jnp.bfloat16)

    # Split fc1 weight into its ctx / resp halves (PyTorch (out, in) layout).
    w1_ctx = w1[:, :hidden].astype(jnp.bfloat16)                   # (H, H)
    w1_resp = w1[:, hidden:].astype(jnp.bfloat16)                  # (H, H)
    w2_b = w2.astype(jnp.bfloat16)                                 # (H/2, H)
    b1c = b1.reshape(hidden, 1).astype(jnp.float32)
    b2c = b2.reshape(h2dim, 1).astype(jnp.float32)
    w3c = w3.reshape(h2dim, 1).astype(jnp.float32)
    b3s = b3.reshape(1).astype(jnp.float32)

    grid = (num_bt, n_resp)   # response axis innermost -> ctx partial cached

    out = pl.pallas_call(
        _sim_kernel,
        out_shape=jax.ShapeDtypeStruct((1, n_resp * b_pad), jnp.float32),
        grid_spec=pltpu.PrefetchScalarGridSpec(
            num_scalar_prefetch=0,
            grid=grid,
            in_specs=[
                # ctx tile: same block across the inner response loop.
                pl.BlockSpec((tb, hidden), lambda bt, n: (bt, 0)),
                # resp tile: natural (N_RESP, B, H) layout, resp dim squeezed.
                pl.BlockSpec((None, tb, hidden), lambda bt, n: (n, bt, 0)),
                # Weights / biases: block (0, 0) every step -> VMEM-resident.
                pl.BlockSpec((hidden, hidden), lambda bt, n: (0, 0)),
                pl.BlockSpec((hidden, hidden), lambda bt, n: (0, 0)),
                pl.BlockSpec((hidden, 1), lambda bt, n: (0, 0)),
                pl.BlockSpec((h2dim, hidden), lambda bt, n: (0, 0)),
                pl.BlockSpec((h2dim, 1), lambda bt, n: (0, 0)),
                pl.BlockSpec((h2dim, 1), lambda bt, n: (0, 0)),
                # b3 scalar: SMEM, avoids a padded (8,128) VMEM tile + DMA.
                pl.BlockSpec(memory_space=pltpu.MemorySpace.SMEM),
            ],
            out_specs=pl.BlockSpec((1, tb),
                                   lambda bt, n: (0, n * num_bt + bt)),
            scratch_shapes=[pltpu.VMEM((hidden, tb), jnp.float32)],
        ),
        compiler_params=pltpu.CompilerParams(
            dimension_semantics=("parallel", "arbitrary")),
    )(ctx_p, resp_p, w1_ctx, w1_resp, b1c, w2_b, b2c, w3c, b3s)

    # (1, N_RESP * B_pad) -> (N_RESP, B_pad) is a free row-major view; drop pad.
    return out.reshape(n_resp, b_pad)[:, :batch]


def make_params(key, hidden):
    """Deterministic init in PyTorch nn.Linear layouts ((out, in) weights)."""
    h2 = hidden // 2
    k = jax.random.split(key, 6)
    scale = 0.1
    w1 = scale * jax.random.normal(k[0], (hidden, 2 * hidden), jnp.float32)  # fc1.weight
    b1 = scale * jax.random.normal(k[1], (hidden,), jnp.float32)
    w2 = scale * jax.random.normal(k[2], (h2, hidden), jnp.float32)          # fc2.weight
    b2 = scale * jax.random.normal(k[3], (h2,), jnp.float32)
    w3 = scale * jax.random.normal(k[4], (1, h2), jnp.float32)               # fc3.weight
    b3 = scale * jax.random.normal(k[5], (1,), jnp.float32)
    return (w1, b1, w2, b2, w3, b3)


def reference_forward(context_hidden, resp_hidden, params):
    """Pure-JAX f32 mirror of the PyTorch forward, used only for verification."""
    w1, b1, w2, b2, w3, b3 = params
    n_resp, batch, hidden = resp_hidden.shape
    ctx = context_hidden.reshape(batch, hidden)
    rows = []
    for i in range(n_resp):
        x = jnp.concatenate([ctx, resp_hidden[i]], axis=1)
        h1 = jnp.tanh(x @ w1.T + b1)
        h2 = jnp.tanh(h1 @ w2.T + b2)
        s = jax.nn.sigmoid(h2 @ w3.T + b3)
        rows.append(s[:, 0])
    return jnp.stack(rows)


if __name__ == "__main__":
    B, H, N_RESP = 8, 32, 2   # score is hard-coded to 2 rows in the PyTorch module
    key = jax.random.PRNGKey(0)
    k_ctx, k_resp, k_param = jax.random.split(key, 3)

    context_hidden = jax.random.normal(k_ctx, (1, B, H), jnp.float32)
    resp_hidden = jax.random.normal(k_resp, (N_RESP, B, H), jnp.float32)
    params = make_params(k_param, H)

    score = jax.jit(similarity_forward)(context_hidden, resp_hidden, params)
    score = jax.block_until_ready(score)

    ref = reference_forward(context_hidden, resp_hidden, params)
    # bf16 MXU operands (f32 accumulation) -> tolerance loosened vs the pure
    # f32 reference, per the performance review; observed error is ~1e-3.
    np.testing.assert_allclose(np.asarray(score), np.asarray(ref),
                               rtol=1e-2, atol=1e-2)
    assert score.shape == (N_RESP, B)

    # TODO(synk): cos_similarity() is a separate method (not part of forward) and is
    # intentionally not implemented here.
    print("KERNEL_OK")
</pallas_src>

<mosaic_0001>
module attributes {stable_mosaic.version = 11 : i64} {
  func.func @_sim_kernel(%arg0: i32, %arg1: i32, %arg2: memref<128x32xbf16, #tpu.memory_space<vmem>>, %arg3: memref<1x128x32xbf16, #tpu.memory_space<vmem>>, %arg4: memref<32x32xbf16, #tpu.memory_space<vmem>>, %arg5: memref<32x32xbf16, #tpu.memory_space<vmem>>, %arg6: memref<32x1xf32, #tpu.memory_space<vmem>>, %arg7: memref<16x32xbf16, #tpu.memory_space<vmem>>, %arg8: memref<16x1xf32, #tpu.memory_space<vmem>>, %arg9: memref<16x1xf32, #tpu.memory_space<vmem>>, %arg10: memref<1xf32, #tpu.memory_space<smem>>, %arg11: memref<1x128xf32, #tpu.memory_space<vmem>>, %arg12: memref<32x128xf32, #tpu.memory_space<vmem>>) attributes {dimension_semantics = [#tpu.dimension_semantics<parallel>, #tpu.dimension_semantics<arbitrary>], iteration_bounds = array<i64: 1, 2>, scalar_prefetch = 0 : i64, scratch_operands = 1 : i64, tpu.core_type = #tpu.core_type<tc>, window_params = [{transform_indices = @transform_0, window_bounds = array<i64: 128, 32>}, {transform_indices = @transform_1, window_bounds = array<i64: 1, 128, 32>}, {pipeline_mode = #tpu.pipeline_mode<synchronous>, transform_indices = @transform_2, window_bounds = array<i64: 32, 32>}, {pipeline_mode = #tpu.pipeline_mode<synchronous>, transform_indices = @transform_3, window_bounds = array<i64: 32, 32>}, {pipeline_mode = #tpu.pipeline_mode<synchronous>, transform_indices = @transform_4, window_bounds = array<i64: 32, 1>}, {pipeline_mode = #tpu.pipeline_mode<synchronous>, transform_indices = @transform_5, window_bounds = array<i64: 16, 32>}, {pipeline_mode = #tpu.pipeline_mode<synchronous>, transform_indices = @transform_6, window_bounds = array<i64: 16, 1>}, {pipeline_mode = #tpu.pipeline_mode<synchronous>, transform_indices = @transform_7, window_bounds = array<i64: 16, 1>}, {transform_indices = @transform_8, window_bounds = array<i64: 1>}, {transform_indices = @transform_9, window_bounds = array<i64: 1, 128>}]} {
    %c0_i32 = arith.constant 0 : i32
    %0 = arith.cmpi eq, %arg1, %c0_i32 : i32
    %1 = arith.extui %0 : i1 to i32
    %c0_i32_0 = arith.constant 0 : i32
    %2 = arith.cmpi ne, %1, %c0_i32_0 : i32
    scf.if %2 {
      %c0_21 = arith.constant 0 : index
      %c0_22 = arith.constant 0 : index
      %34 = vector.load %arg4[%c0_21, %c0_22] : memref<32x32xbf16, #tpu.memory_space<vmem>>, vector<32x32xbf16>
      %c0_23 = arith.constant 0 : index
      %c0_24 = arith.constant 0 : index
      %35 = vector.load %arg2[%c0_23, %c0_24] : memref<128x32xbf16, #tpu.memory_space<vmem>>, vector<128x32xbf16>
      %cst_25 = arith.constant dense<0.000000e+00> : vector<32x128xf32>
      %36 = tpu.matmul %34, %35, %cst_25 {dimension_numbers = #tpu.dot_dimension_numbers<[1], [1], [0], [0], [0, 0, 1, 0], [], []>} : vector<32x32xbf16>, vector<128x32xbf16>, vector<32x128xf32> -> vector<32x128xf32>
      %c0_26 = arith.constant 0 : index
      %c0_27 = arith.constant 0 : index
      %37 = vector.load %arg12[%c0_26, %c0_27] : memref<32x128xf32, #tpu.memory_space<vmem>>, vector<32x128xf32>
      tpu.vector_store %arg12[%c0_26, %c0_27], %36 {strides = array<i32>} : memref<32x128xf32, #tpu.memory_space<vmem>>, vector<32x128xf32>,
    } else {
    }
    %c0 = arith.constant 0 : index
    %c0_1 = arith.constant 0 : index
    %3 = vector.load %arg5[%c0, %c0_1] : memref<32x32xbf16, #tpu.memory_space<vmem>>, vector<32x32xbf16>
    %c0_2 = arith.constant 0 : index
    %c0_3 = arith.constant 0 : index
    %c0_4 = arith.constant 0 : index
    %4 = vector.load %arg3[%c0_2, %c0_3, %c0_4] : memref<1x128x32xbf16, #tpu.memory_space<vmem>>, vector<1x128x32xbf16>
    %5 = vector.shape_cast %4 : vector<1x128x32xbf16> to vector<128x32xbf16>
    %cst = arith.constant dense<0.000000e+00> : vector<32x128xf32>
    %6 = tpu.matmul %3, %5, %cst {dimension_numbers = #tpu.dot_dimension_numbers<[1], [1], [0], [0], [0, 0, 1, 0], [], []>} : vector<32x32xbf16>, vector<128x32xbf16>, vector<32x128xf32> -> vector<32x128xf32>
    %c0_5 = arith.constant 0 : index
    %c0_6 = arith.constant 0 : index
    %7 = vector.load %arg12[%c0_5, %c0_6] : memref<32x128xf32, #tpu.memory_space<vmem>>, vector<32x128xf32>
    %8 = arith.addf %7, %6 : vector<32x128xf32>
    %c0_7 = arith.constant 0 : index
    %c0_8 = arith.constant 0 : index
    %9 = vector.load %arg6[%c0_7, %c0_8] : memref<32x1xf32, #tpu.memory_space<vmem>>, vector<32x1xf32>
    %10 = vector.broadcast %9 : vector<32x1xf32> to vector<32x128xf32>
    %11 = arith.addf %8, %10 : vector<32x128xf32>
    %12 = math.tanh %11 : vector<32x128xf32>
    %c0_9 = arith.constant 0 : index
    %c0_10 = arith.constant 0 : index
    %13 = vector.load %arg7[%c0_9, %c0_10] : memref<16x32xbf16, #tpu.memory_space<vmem>>, vector<16x32xbf16>
    %14 = arith.truncf %12 : vector<32x128xf32> to vector<32x128xbf16>
    %cst_11 = arith.constant dense<0.000000e+00> : vector<16x128xf32>
    %15 = tpu.matmul %13, %14, %cst_11 {dimension_numbers = #tpu.dot_dimension_numbers<[1], [0], [0], [1], [0, 0, 1, 1], [], []>} : vector<16x32xbf16>, vector<32x128xbf16>, vector<16x128xf32> -> vector<16x128xf32>
    %c0_12 = arith.constant 0 : index
    %c0_13 = arith.constant 0 : index
    %16 = vector.load %arg8[%c0_12, %c0_13] : memref<16x1xf32, #tpu.memory_space<vmem>>, vector<16x1xf32>
    %17 = vector.broadcast %16 : vector<16x1xf32> to vector<16x128xf32>
    %18 = arith.addf %15, %17 : vector<16x128xf32>
    %19 = math.tanh %18 : vector<16x128xf32>
    %c0_14 = arith.constant 0 : index
    %c0_15 = arith.constant 0 : index
    %20 = vector.load %arg9[%c0_14, %c0_15] : memref<16x1xf32, #tpu.memory_space<vmem>>, vector<16x1xf32>
    %21 = vector.broadcast %20 : vector<16x1xf32> to vector<16x128xf32>
    %22 = arith.mulf %19, %21 : vector<16x128xf32>
    %cst_16 = arith.constant dense<0.000000e+00> : vector<128xf32>
    %23 = vector.multi_reduction <add>, %22, %cst_16 [0] : vector<16x128xf32> to vector<128xf32>
    %24 = vector.shape_cast %23 : vector<128xf32> to vector<1x128xf32>
    %c0_17 = arith.constant 0 : index
    %25 = memref.load %arg10[%c0_17] : memref<1xf32, #tpu.memory_space<smem>>
    %26 = vector.broadcast %25 : f32 to vector<1x128xf32>
    %27 = arith.addf %24, %26 : vector<1x128xf32>
    %28 = arith.negf %27 : vector<1x128xf32>
    %29 = math.exp %28 : vector<1x128xf32>
    %cst_18 = arith.constant 1.000000e+00 : f32
    %30 = vector.broadcast %cst_18 : f32 to vector<1x128xf32>
    %31 = arith.addf %30, %29 : vector<1x128xf32>
    %32 = arith.divf %30, %31 : vector<1x128xf32>
    %c0_19 = arith.constant 0 : index
    %c0_20 = arith.constant 0 : index
    %33 = vector.load %arg11[%c0_19, %c0_20] : memref<1x128xf32, #tpu.memory_space<vmem>>, vector<1x128xf32>
    tpu.vector_store %arg11[%c0_19, %c0_20], %32 {strides = array<i32>} : memref<1x128xf32, #tpu.memory_space<vmem>>, vector<1x128xf32>,
    return
  }
  func.func @transform_0(%arg0: i32, %arg1: i32) -> (i32, i32) {
    %c0_i32 = arith.constant 0 : i32
    %c0_i32_0 = arith.constant 0 : i32
    return %arg0, %c0_i32 : i32, i32
  }
  func.func @transform_1(%arg0: i32, %arg1: i32) -> (i32, i32, i32) {
    %c0_i32 = arith.constant 0 : i32
    %c0_i32_0 = arith.constant 0 : i32
    return %arg1, %arg0, %c0_i32 : i32, i32, i32
  }
  func.func @transform_2(%arg0: i32, %arg1: i32) -> (i32, i32) {
    %c0_i32 = arith.constant 0 : i32
    %c0_i32_0 = arith.constant 0 : i32
    %c0_i32_1 = arith.constant 0 : i32
    return %c0_i32, %c0_i32_0 : i32, i32
  }
  func.func @transform_3(%arg0: i32, %arg1: i32) -> (i32, i32) {
    %c0_i32 = arith.constant 0 : i32
    %c0_i32_0 = arith.constant 0 : i32
    %c0_i32_1 = arith.constant 0 : i32
    return %c0_i32, %c0_i32_0 : i32, i32
  }
  func.func @transform_4(%arg0: i32, %arg1: i32) -> (i32, i32) {
    %c0_i32 = arith.constant 0 : i32
    %c0_i32_0 = arith.constant 0 : i32
    %c0_i32_1 = arith.constant 0 : i32
    return %c0_i32, %c0_i32_0 : i32, i32
  }
  func.func @transform_5(%arg0: i32, %arg1: i32) -> (i32, i32) {
    %c0_i32 = arith.constant 0 : i32
    %c0_i32_0 = arith.constant 0 : i32
    %c0_i32_1 = arith.constant 0 : i32
    return %c0_i32, %c0_i32_0 : i32, i32
  }
  func.func @transform_6(%arg0: i32, %arg1: i32) -> (i32, i32) {
    %c0_i32 = arith.constant 0 : i32
    %c0_i32_0 = arith.constant 0 : i32
    %c0_i32_1 = arith.constant 0 : i32
    return %c0_i32, %c0_i32_0 : i32, i32
  }
  func.func @transform_7(%arg0: i32, %arg1: i32) -> (i32, i32) {
    %c0_i32 = arith.constant 0 : i32
    %c0_i32_0 = arith.constant 0 : i32
    %c0_i32_1 = arith.constant 0 : i32
    return %c0_i32, %c0_i32_0 : i32, i32
  }
  func.func @transform_8(%arg0: i32, %arg1: i32) -> i32 {
    %c0_i32 = arith.constant 0 : i32
    %c0_i32_0 = arith.constant 0 : i32
    return %c0_i32 : i32
  }
  func.func @transform_9(%arg0: i32, %arg1: i32) -> (i32, i32) {
    %c1_i32 = arith.constant 1 : i32
    %0 = arith.muli %arg1, %c1_i32 : i32
    %1 = arith.addi %0, %arg0 : i32
    %c0_i32 = arith.constant 0 : i32
    %c0_i32_0 = arith.constant 0 : i32
    return %c0_i32, %1 : i32, i32
  }
}

</mosaic_0001>

<llo_original>
// kernel: similarity_forward.1
$region0: #{similarity_forward.1}
  #allocation0 [shape = 'u32[]', space=smem, size = 0x4, offset = 0x4, fixed_abs, tag = 'smem constant byte address 0x4 - core index']
  #allocation1 [shape = 'u32[144,128]{1,0:T(1,128)}', space=vmem, size = 0x12000, scoped, tag = 'internal scratch']
  #allocation2 [shape = 'f32[32,128]{1,0:T(8,128)}', space=vmem, size = 0x4000, scoped, tag = 'scratch operand']
  #allocation3 [shape = 'f32[1]{0:T(128)S(6)}', space=smem, size = 0x200, scoped, tag = 'scoped memory for similarity_forward.1']
  %s0 = inlined_call_operand.vmem [shape: bf16[128,32], index: 0, kind: input, shape index: {}]
  %s1 = inlined_call_operand.vmem [shape: bf16[2,128,32], index: 1, kind: input, shape index: {}]
  %s2 = inlined_call_operand.vmem [shape: bf16[32,32], index: 2, kind: input, shape index: {}]
  %s3 = inlined_call_operand.vmem [shape: bf16[32,32], index: 3, kind: input, shape index: {}]
  %s4 = inlined_call_operand.vmem [shape: f32[32,1], index: 4, kind: input, shape index: {}]
  %s5 = inlined_call_operand.vmem [shape: bf16[16,32], index: 5, kind: input, shape index: {}]
  %s6 = inlined_call_operand.vmem [shape: f32[16,1], index: 6, kind: input, shape index: {}]
  %s7 = inlined_call_operand.vmem [shape: f32[16,1], index: 7, kind: input, shape index: {}]
  %s8 = inlined_call_operand.<no memory space> [shape: f32[1], index: 8, kind: input, shape index: {}]
  %s9 = inlined_call_operand.hbm [shape: f32[1,256], index: 9, kind: output, shape index: {}]
  %s10 = sld [smem:[#allocation0]]
  $region73: #{similarity_forward.1} parent=0
    _
  %s12 = ssub.s32 1, %s10
  %s13 = scalar_select 0, %s12, %s10
  %14 = sst [smem:[#allocation3]] %s8
  $region1: #{similarity_forward.1} parent=0
    #allocation4 [shape = 'u8[1024]{0}', space=vmem, size = 0x400, scoped, tag = 'output window, operand 0']
    #allocation5 [shape = 's32[2]{0}', space=sflag, size = 0x8, scoped, tag = 'scoped memory for similarity_forward.1']
    %15 = vsyncpa [#allocation5], 0
    %s16 = scalar_lea.sflag [#allocation5], 1
    %17 = vsyncpa %s16, 0
    loop: start=0, step=1, limit=4
    $region2: #{similarity_forward.1} parent=1 // loop_pre_header
      _
    $region3: #{similarity_forward.1} parent=1 // loop_header
      %s19 = sphi 0, %s23
      %p20 = scmp.ge.s32.totalorder %s19, 4
      %s26 = sphi 0, %s38
      %s27 = sphi 0, %s34
      %s28 = sphi 0, %s26
      %s29 = sphi 0, %s27
      %s30 = sphi 0, %s28
      %s31 = sphi 0, %s29
      %s41 = sphi 0, %s43
      %s44 = sphi 0, %s41
      %s45 = sphi 0, %s44
      %s61 = sphi 0, %s45
      %s69 = sphi 0, %s71
      %s72 = sphi 0, %s69
      %s73 = sphi 0, %s72
      %s89 = sphi 0, %s73
      %s93 = sphi 0, %s93
      %s95 = sphi 0, %s93
      %s96 = sphi 0, %s95
      %s110 = sphi 0, %s96
      %s114 = sphi 0, %s114
      %s116 = sphi 0, %s114
      %s117 = sphi 0, %s116
      %s131 = sphi 0, %s117
      %s135 = sphi 0, %s135
      %s137 = sphi 0, %s135
      %s138 = sphi 0, %s137
      %s152 = sphi 0, %s138
      %s156 = sphi 0, %s156
      %s158 = sphi 0, %s156
      %s159 = sphi 0, %s158
      %s173 = sphi 0, %s159
      %s177 = sphi 0, %s177
      %s179 = sphi 0, %s177
      %s180 = sphi 0, %s179
      %s194 = sphi 0, %s180
      %s198 = sphi 0, %s198
      %s200 = sphi 0, %s198
      %s201 = sphi 0, %s200
      %s215 = sphi 0, %s201
      %s219 = sphi 0, %s219
      %s221 = sphi 0, %s219
      %s222 = sphi 0, %s221
      %s236 = sphi 0, %s222
      %s244 = sphi 0, %s246
      %s247 = sphi 0, %s244
      %s248 = sphi 0, %s247
      %s264 = sphi 0, %s248
    $region4: #{similarity_forward.1} parent=1 // loop_header_branch
      %22 = sbr.rel (%p20) target = $region8
    $region5: #{similarity_forward.1} parent=1 // loop_body
      %s24 = ssub.s32 %s19, 1
      %s25 = ssub.s32 %s19, 2
      %s32 = sadd.s32 1, %s27
      %p33 = scmp.ge.s32.totalorder %s32, 2
      %s34 = scalar_select %p33, 0, %s32
      %s35 = sadd.s32 1, %s26
      %s36 = scalar_select %p33, %s35, %s26
      %p37 = scmp.ge.s32.totalorder %s36, 1
      %s38 = scalar_select %p37, 0, %s36
      %s39 = ssub.s32 %s26, %s38
      %p40 = scmp.eq.s32.totalorder %s39, 0
      %s42 = sadd.s32 %s41, 1
      %s43 = scalar_select %p40, %s41, %s42
      %p46 = pneg %p40
      %p47 = scmp.eq.s32.totalorder %s19, 1
      %p48 = por %p46, %p47
      %p49 = scmp.ne.s32.totalorder %s41, %s44
      %p50 = scmp.eq.s32.totalorder %s19, 0
      %p51 = por %p49, %p50
      %p52 = scmp.ne.s32.totalorder %s41, %s44
      %p53 = scmp.eq.s32.totalorder %s24, 1
      %p54 = por %p52, %p53
      %p55 = scmp.ne.s32.totalorder %s44, %s45
      %p56 = scmp.eq.s32.totalorder %s24, 0
      %p57 = por %p55, %p56
      %p58 = scmp.ne.s32.totalorder %s44, %s45
      %p59 = scmp.eq.s32.totalorder %s25, 1
      %p60 = por %p58, %p59
      %p62 = scmp.ne.s32.totalorder %s45, %s61
      %p63 = scmp.eq.s32.totalorder %s25, 0
      %p64 = por %p62, %p63
      %s65 = ssub.s32 %s27, %s34
      %s66 = ssub.s32 %s26, %s38
      %s67 = sor.u32 %s65, %s66
      %p68 = scmp.eq.s32.totalorder %s67, 0
      %s70 = sadd.s32 %s69, 1
      %s71 = scalar_select %p68, %s69, %s70
      %p74 = pneg %p68
      %p75 = scmp.eq.s32.totalorder %s19, 1
      %p76 = por %p74, %p75
      %p77 = scmp.ne.s32.totalorder %s69, %s72
      %p78 = scmp.eq.s32.totalorder %s19, 0
      %p79 = por %p77, %p78
      %p80 = scmp.ne.s32.totalorder %s69, %s72
      %p81 = scmp.eq.s32.totalorder %s24, 1
      %p82 = por %p80, %p81
      %p83 = scmp.ne.s32.totalorder %s72, %s73
      %p84 = scmp.eq.s32.totalorder %s24, 0
      %p85 = por %p83, %p84
      %p86 = scmp.ne.s32.totalorder %s72, %s73
      %p87 = scmp.eq.s32.totalorder %s25, 1
      %p88 = por %p86, %p87
      %p90 = scmp.ne.s32.totalorder %s73, %s89
      %p91 = scmp.eq.s32.totalorder %s25, 0
      %p92 = por %p90, %p91
      %s94 = sadd.s32 %s93, 1
      %p97 = scmp.eq.s32.totalorder %s19, 1
      %p98 = scmp.ne.s32.totalorder %s93, %s95
      %p99 = scmp.eq.s32.totalorder %s19, 0
      %p100 = por %p98, %p99
      %p101 = scmp.ne.s32.totalorder %s93, %s95
      %p102 = scmp.eq.s32.totalorder %s24, 1
      %p103 = por %p101, %p102
      %p104 = scmp.ne.s32.totalorder %s95, %s96
      %p105 = scmp.eq.s32.totalorder %s24, 0
      %p106 = por %p104, %p105
      %p107 = scmp.ne.s32.totalorder %s95, %s96
      %p108 = scmp.eq.s32.totalorder %s25, 1
      %p109 = por %p107, %p108
      %p111 = scmp.ne.s32.totalorder %s96, %s110
      %p112 = scmp.eq.s32.totalorder %s25, 0
      %p113 = por %p111, %p112
      %s115 = sadd.s32 %s114, 1
      %p118 = scmp.eq.s32.totalorder %s19, 1
      %p119 = scmp.ne.s32.totalorder %s114, %s116
      %p120 = scmp.eq.s32.totalorder %s19, 0
      %p121 = por %p119, %p120
      %p122 = scmp.ne.s32.totalorder %s114, %s116
      %p123 = scmp.eq.s32.totalorder %s24, 1
      %p124 = por %p122, %p123
      %p125 = scmp.ne.s32.totalorder %s116, %s117
      %p126 = scmp.eq.s32.totalorder %s24, 0
      %p127 = por %p125, %p126
      %p128 = scmp.ne.s32.totalorder %s116, %s117
      %p129 = scmp.eq.s32.totalorder %s25, 1
      %p130 = por %p128, %p129
      %p132 = scmp.ne.s32.totalorder %s117, %s131
      %p133 = scmp.eq.s32.totalorder %s25, 0
      %p134 = por %p132, %p133
      %s136 = sadd.s32 %s135, 1
      %p139 = scmp.eq.s32.totalorder %s19, 1
      %p140 = scmp.ne.s32.totalorder %s135, %s137
      %p141 = scmp.eq.s32.totalorder %s19, 0
      %p142 = por %p140, %p141
      %p143 = scmp.ne.s32.totalorder %s135, %s137
      %p144 = scmp.eq.s32.totalorder %s24, 1
      %p145 = por %p143, %p144
      %p146 = scmp.ne.s32.totalorder %s137, %s138
      %p147 = scmp.eq.s32.totalorder %s24, 0
      %p148 = por %p146, %p147
      %p149 = scmp.ne.s32.totalorder %s137, %s138
      %p150 = scmp.eq.s32.totalorder %s25, 1
      %p151 = por %p149, %p150
      %p153 = scmp.ne.s32.totalorder %s138, %s152
      %p154 = scmp.eq.s32.totalorder %s25, 0
      %p155 = por %p153, %p154
      %s157 = sadd.s32 %s156, 1
      %p160 = scmp.eq.s32.totalorder %s19, 1
      %p161 = scmp.ne.s32.totalorder %s156, %s158
      %p162 = scmp.eq.s32.totalorder %s19, 0
      %p163 = por %p161, %p162
      %p164 = scmp.ne.s32.totalorder %s156, %s158
      %p165 = scmp.eq.s32.totalorder %s24, 1
      %p166 = por %p164, %p165
      %p167 = scmp.ne.s32.totalorder %s158, %s159
      %p168 = scmp.eq.s32.totalorder %s24, 0
      %p169 = por %p167, %p168
      %p170 = scmp.ne.s32.totalorder %s158, %s159
      %p171 = scmp.eq.s32.totalorder %s25, 1
      %p172 = por %p170, %p171
      %p174 = scmp.ne.s32.totalorder %s159, %s173
      %p175 = scmp.eq.s32.totalorder %s25, 0
      %p176 = por %p174, %p175
      %s178 = sadd.s32 %s177, 1
      %p181 = scmp.eq.s32.totalorder %s19, 1
      %p182 = scmp.ne.s32.totalorder %s177, %s179
      %p183 = scmp.eq.s32.totalorder %s19, 0
      %p184 = por %p182, %p183
      %p185 = scmp.ne.s32.totalorder %s177, %s179
      %p186 = scmp.eq.s32.totalorder %s24, 1
      %p187 = por %p185, %p186
      %p188 = scmp.ne.s32.totalorder %s179, %s180
      %p189 = scmp.eq.s32.totalorder %s24, 0
      %p190 = por %p188, %p189
      %p191 = scmp.ne.s32.totalorder %s179, %s180
      %p192 = scmp.eq.s32.totalorder %s25, 1
      %p193 = por %p191, %p192
      %p195 = scmp.ne.s32.totalorder %s180, %s194
      %p196 = scmp.eq.s32.totalorder %s25, 0
      %p197 = por %p195, %p196
      %s199 = sadd.s32 %s198, 1
      %p202 = scmp.eq.s32.totalorder %s19, 1
      %p203 = scmp.ne.s32.totalorder %s198, %s200
      %p204 = scmp.eq.s32.totalorder %s19, 0
      %p205 = por %p203, %p204
      %p206 = scmp.ne.s32.totalorder %s198, %s200
      %p207 = scmp.eq.s32.totalorder %s24, 1
      %p208 = por %p206, %p207
      %p209 = scmp.ne.s32.totalorder %s200, %s201
      %p210 = scmp.eq.s32.totalorder %s24, 0
      %p211 = por %p209, %p210
      %p212 = scmp.ne.s32.totalorder %s200, %s201
      %p213 = scmp.eq.s32.totalorder %s25, 1
      %p214 = por %p212, %p213
      %p216 = scmp.ne.s32.totalorder %s201, %s215
      %p217 = scmp.eq.s32.totalorder %s25, 0
      %p218 = por %p216, %p217
      %s220 = sadd.s32 %s219, 1
      %p223 = scmp.eq.s32.totalorder %s19, 1
      %p224 = scmp.ne.s32.totalorder %s219, %s221
      %p225 = scmp.eq.s32.totalorder %s19, 0
      %p226 = por %p224, %p225
      %p227 = scmp.ne.s32.totalorder %s219, %s221
      %p228 = scmp.eq.s32.totalorder %s24, 1
      %p229 = por %p227, %p228
      %p230 = scmp.ne.s32.totalorder %s221, %s222
      %p231 = scmp.eq.s32.totalorder %s24, 0
      %p232 = por %p230, %p231
      %p233 = scmp.ne.s32.totalorder %s221, %s222
      %p234 = scmp.eq.s32.totalorder %s25, 1
      %p235 = por %p233, %p234
      %p237 = scmp.ne.s32.totalorder %s222, %s236
      %p238 = scmp.eq.s32.totalorder %s25, 0
      %p239 = por %p237, %p238
      %s240 = sadd.s32 %s27, %s26
      %s241 = sadd.s32 %s34, %s38
      %s242 = ssub.s32 %s240, %s241
      %p243 = scmp.eq.s32.totalorder %s242, 0
      %s245 = sadd.s32 %s244, 1
      %s246 = scalar_select %p243, %s244, %s245
      %p249 = pneg %p243
      %p250 = scmp.eq.s32.totalorder %s19, 1
      %p251 = por %p249, %p250
      %p252 = scmp.ne.s32.totalorder %s244, %s247
      %p253 = scmp.eq.s32.totalorder %s19, 0
      %p254 = por %p252, %p253
      %p255 = scmp.ne.s32.totalorder %s244, %s247
      %p256 = scmp.eq.s32.totalorder %s24, 1
      %p257 = por %p255, %p256
      %p258 = scmp.ne.s32.totalorder %s247, %s248
      %p259 = scmp.eq.s32.totalorder %s24, 0
      %p260 = por %p258, %p259
      %p261 = scmp.ne.s32.totalorder %s247, %s248
      %p262 = scmp.eq.s32.totalorder %s25, 1
      %p263 = por %p261, %p262
      %p265 = scmp.ne.s32.totalorder %s248, %s264
      %p266 = scmp.eq.s32.totalorder %s25, 0
      %p267 = por %p265, %p266
      %p268 = scmp.le.s32.totalorder 1, %s19
      %p269 = scmp.lt.s32.totalorder %s19, 3
      %p270 = pnand %p268, %p269
      %p271 = pneg %p270
      // Predicated region
      $region9: #{similarity_forward.1} parent=5 // pred_check
        _
      $region10: #{similarity_forward.1} parent=5 // pred_check_branch
        %273 = sbr.rel (%p270) target = $region12
      $region11: #{similarity_forward.1} parent=5 // pred_region
        %s274 = ssub.s32 %s19, 1
        // Predicated region
        $region13: #{similarity_forward.1} parent=11 // pred_check
          %p275 = pneg %p57
        $region14: #{similarity_forward.1} parent=11 // pred_check_branch
          %277 = sbr.rel (%p275) target = $region16
        $region15: #{similarity_forward.1} parent=11 // pred_region
          %s278 = smul.u32 16, %s28
          %p279 = scmp.lt.s32.totalorder %s278, 15
          %s280 = scalar_select %p279, %s278, 15
          %s281 = smul.addr %s280, 4
          %s282 = scalar_lea.vmem %s0, %s281
          %s283 = smul.u32 16, %s28
        $region16: #{similarity_forward.1} parent=11 // pred_fallthru
          _
        // Predicated region
        $region17: #{similarity_forward.1} parent=11 // pred_check
          %p284 = pneg %p106
        $region18: #{similarity_forward.1} parent=11 // pred_check_branch
          %286 = sbr.rel (%p284) target = $region20
        $region19: #{similarity_forward.1} parent=11 // pred_region
          _
        $region20: #{similarity_forward.1} parent=11 // pred_fallthru
          _
        // Predicated region
        $region21: #{similarity_forward.1} parent=11 // pred_check
          %p287 = pneg %p127
        $region22: #{similarity_forward.1} parent=11 // pred_check_branch
          %289 = sbr.rel (%p287) target = $region24
        $region23: #{similarity_forward.1} parent=11 // pred_region
          _
        $region24: #{similarity_forward.1} parent=11 // pred_fallthru
          _
        // Predicated region
        $region25: #{similarity_forward.1} parent=11 // pred_check
          %p290 = pneg %p148
        $region26: #{similarity_forward.1} parent=11 // pred_check_branch
          %292 = sbr.rel (%p290) target = $region28
        $region27: #{similarity_forward.1} parent=11 // pred_region
          _
        $region28: #{similarity_forward.1} parent=11 // pred_fallthru
          _
        // Predicated region
        $region29: #{similarity_forward.1} parent=11 // pred_check
          %p293 = pneg %p169
        $region30: #{similarity_forward.1} parent=11 // pred_check_branch
          %295 = sbr.rel (%p293) target = $region32
        $region31: #{similarity_forward.1} parent=11 // pred_region
          _
        $region32: #{similarity_forward.1} parent=11 // pred_fallthru
          _
        // Predicated region
        $region33: #{similarity_forward.1} parent=11 // pred_check
          %p296 = pneg %p190
        $region34: #{similarity_forward.1} parent=11 // pred_check_branch
          %298 = sbr.rel (%p296) target = $region36
        $region35: #{similarity_forward.1} parent=11 // pred_region
          _
        $region36: #{similarity_forward.1} parent=11 // pred_fallthru
          _
        // Predicated region
        $region37: #{similarity_forward.1} parent=11 // pred_check
          %p299 = pneg %p211
        $region38: #{similarity_forward.1} parent=11 // pred_check_branch
          %301 = sbr.rel (%p299) target = $region40
        $region39: #{similarity_forward.1} parent=11 // pred_region
          _
        $region40: #{similarity_forward.1} parent=11 // pred_fallthru
          _
        // Predicated region
        $region41: #{similarity_forward.1} parent=11 // pred_check
          %p302 = pneg %p232
        $region42: #{similarity_forward.1} parent=11 // pred_check_branch
          %304 = sbr.rel (%p302) target = $region44
        $region43: #{similarity_forward.1} parent=11 // pred_region
          _
        $region44: #{similarity_forward.1} parent=11 // pred_fallthru
          _
      $region12: #{similarity_forward.1} parent=5 // pred_fallthru
        _
      %p305 = scmp.lt.s32.totalorder %s19, 2
      // Predicated region
      $region45: #{similarity_forward.1} parent=5 // pred_check
        %p306 = pneg %p305
      $region46: #{similarity_forward.1} parent=5 // pred_check_branch
        %308 = sbr.rel (%p306) target = $region48
      $region47: #{similarity_forward.1} parent=5 // pred_region
        // Predicated region
        $region49: #{similarity_forward.1} parent=47 // pred_check
          %p309 = pneg %p79
        $region50: #{similarity_forward.1} parent=47 // pred_check_branch
          %311 = sbr.rel (%p309) target = $region52
        $region51: #{similarity_forward.1} parent=47 // pred_region
          %s312 = smul.u32 16, %s26
          %p313 = scmp.lt.s32.totalorder %s27, 1
          %s314 = scalar_select %p313, %s27, 1
          %p315 = scmp.lt.s32.totalorder %s312, 15
          %s316 = scalar_select %p315, %s312, 15
          %s317 = smul.addr %s314, 16
          %s318 = sadd.s32 %s316, %s317
          %s319 = smul.addr %s318, 4
          %s320 = scalar_lea.vmem %s1, %s319
          %s321 = smul.u32 16, %s26
        $region52: #{similarity_forward.1} parent=47 // pred_fallthru
          _
      $region48: #{similarity_forward.1} parent=5 // pred_fallthru
        _
      %p322 = scmp.le.s32.totalorder 1, %s19
      %p323 = scmp.lt.s32.totalorder %s19, 3
      %p324 = pnand %p322, %p323
      %p325 = pneg %p324
      // Predicated region
      $region53: #{similarity_forward.1} parent=5 // pred_check
        _
      $region54: #{similarity_forward.1} parent=5 // pred_check_branch
        %327 = sbr.rel (%p324) target = $region56
      $region55: #{similarity_forward.1} parent=5 // pred_region
        %s328 = ssub.s32 %s19, 1
        %s329 = smul.u32 16, %s28
        %p330 = scmp.lt.s32.totalorder %s329, 15
        %s331 = scalar_select %p330, %s329, 15
        %s332 = smul.addr %s331, 4
        %s333 = scalar_lea.vmem %s0, %s332
        %p334 = pneg %p57
        %p335 = pneg %p54
        %s336 = smul.u32 16, %s28
        %p337 = scmp.lt.s32.totalorder %s29, 1
        %s338 = scalar_select %p337, %s29, 1
        %p339 = scmp.lt.s32.totalorder %s336, 15
        %s340 = scalar_select %p339, %s336, 15
        %s341 = smul.addr %s338, 16
        %s342 = sadd.s32 %s340, %s341
        %s343 = smul.addr %s342, 4
        %s344 = scalar_lea.vmem %s1, %s343
        %p345 = pneg %p85
        %p346 = pneg %p82
        %p347 = pneg %p106
        %p348 = pneg %p103
        %p349 = pneg %p127
        %p350 = pneg %p124
        %p351 = pneg %p148
        %p352 = pneg %p145
        %p353 = pneg %p169
        %p354 = pneg %p166
        %p355 = pneg %p190
        %p356 = pneg %p187
        %p357 = pneg %p211
        %p358 = pneg %p208
        %p359 = pneg %p232
        %p360 = pneg %p229
        %p361 = pneg %p260
        %p362 = pneg %p257
        %s363 = sand.u32 %s247, 1
        %s364 = scalar_lea.sflag [#allocation5], %s363
        %s365 = sand.u32 %s247, 1
        %s366 = scalar_lea.vmem [#allocation4], %s365
        %s367 = smul.u32 16, %s28
        %p368 = scmp.lt.s32.totalorder %s367, 15
        %s369 = scalar_select %p368, %s367, 15
        %s370 = smul.addr %s369, 4
        %s371 = scalar_lea.vmem %s0, %s370
        %s372 = smul.u32 16, %s28
        %s373 = smul.u32 16, %s28
        %p374 = scmp.lt.s32.totalorder %s29, 1
        %s375 = scalar_select %p374, %s29, 1
        %p376 = scmp.lt.s32.totalorder %s373, 15
        %s377 = scalar_select %p376, %s373, 15
        %s378 = smul.addr %s375, 16
        %s379 = sadd.s32 %s377, %s378
        %s380 = smul.addr %s379, 4
        %s381 = scalar_lea.vmem %s1, %s380
        %s382 = smul.u32 16, %s28
        %s383 = sadd.s32 %s29, %s28
        %p385 = scmp.eq.s32.totalorder %s29, 0
        // Predicated region
        $region57: #{similarity_forward.1} parent=55 // pred_check
          %p386 = pneg %p385
        $region58: #{similarity_forward.1} parent=55 // pred_check_branch
          %388 = sbr.rel (%p386) target = $region60
        $region59: #{similarity_forward.1} parent=55 // pred_region
          %v389 = vld [vmem:[%s2] sm:$0xf]
          %v390 = vld [vmem:[%s2 + $0x4] sm:$0xf]
          %v391 = vld [vmem:[%s2 + $0x8] sm:$0xf]
          %v392 = vld [vmem:[%s2 + $0xc] sm:$0xf]
          %v393 = vld [vmem:[%s371] sm:$0xf]
          %v394 = vld [vmem:[%s371 + $0x4] sm:$0xf]
          %v395 = vld [vmem:[%s371 + $0x8] sm:$0xf]
          %v396 = vld [vmem:[%s371 + $0xc] sm:$0xf]
          %v397 = vld [vmem:[%s371 + $0x10] sm:$0xf]
          %v398 = vld [vmem:[%s371 + $0x14] sm:$0xf]
          %v399 = vld [vmem:[%s371 + $0x18] sm:$0xf]
          %v400 = vld [vmem:[%s371 + $0x1c] sm:$0xf]
          %v401 = vld [vmem:[%s371 + $0x20] sm:$0xf]
          %v402 = vld [vmem:[%s371 + $0x24] sm:$0xf]
          %v403 = vld [vmem:[%s371 + $0x28] sm:$0xf]
          %v404 = vld [vmem:[%s371 + $0x2c] sm:$0xf]
          %v405 = vld [vmem:[%s371 + $0x30] sm:$0xf]
          %v406 = vld [vmem:[%s371 + $0x34] sm:$0xf]
          %v407 = vld [vmem:[%s371 + $0x38] sm:$0xf]
          %v408 = vld [vmem:[%s371 + $0x3c] sm:$0xf]
          %v413 = vunpack.c.l.b16 %v389
          %v414 = vunpack.c.l.b16 %v390
          %v415 = vunpack.c.l.b16 %v391
          %v416 = vunpack.c.l.b16 %v392
          %v417 = vpack.c.b16 %v414, %v413
          %v418 = vpack.c.b16 %v416, %v415
          %v435 = vunpack.c.l.b16 %v393
          %v436 = vunpack.c.l.b16 %v394
          %v437 = vunpack.c.l.b16 %v395
          %v438 = vunpack.c.l.b16 %v396
          %v439 = vunpack.c.l.b16 %v397
          %v440 = vunpack.c.l.b16 %v398
          %v441 = vunpack.c.l.b16 %v399
          %v442 = vunpack.c.l.b16 %v400
          %v443 = vunpack.c.l.b16 %v401
          %v444 = vunpack.c.l.b16 %v402
          %v445 = vunpack.c.l.b16 %v403
          %v446 = vunpack.c.l.b16 %v404
          %v447 = vunpack.c.l.b16 %v405
          %v448 = vunpack.c.l.b16 %v406
          %v449 = vunpack.c.l.b16 %v407
          %v450 = vunpack.c.l.b16 %v408
          %v451 = vpack.c.b16 %v436, %v435
          %v452 = vpack.c.b16 %v438, %v437
          %v453 = vpack.c.b16 %v440, %v439
          %v454 = vpack.c.b16 %v442, %v441
          %v455 = vpack.c.b16 %v444, %v443
          %v456 = vpack.c.b16 %v446, %v445
          %v457 = vpack.c.b16 %v448, %v447
          %v458 = vpack.c.b16 %v450, %v449
          %vm459 = vcmask 261120
          %v461 = vsel %vm459, %v417, 0
          %v464 = vsel %vm459, %v418, 0
          %v467 = vsel %vm459, %v451, 0
          %v470 = vsel %vm459, %v452, 0
          %v473 = vsel %vm459, %v453, 0
          %v476 = vsel %vm459, %v454, 0
          %v479 = vsel %vm459, %v455, 0
          %v482 = vsel %vm459, %v456, 0
          %v485 = vsel %vm459, %v457, 0
          %v488 = vsel %vm459, %v458, 0
          %490 = vmatprep.subr.bf16.mxu0 0
          %491 = vmatpush1.bf16.xpose.msra.mxu0 %v467
          %492 = vmatprep.subr.bf16.mxu0 0
          %493 = vmatpush1.bf16.xpose.msra.mxu0 %v470
          %494 = vmatprep.subr.bf16.mxu0 0
          %495 = vmatpush1.bf16.xpose.msra.mxu0 %v473
          %496 = vmatprep.subr.bf16.mxu0 0
          %497 = vmatpush1.bf16.xpose.msra.mxu0 %v476
          %498 = vmatprep.subr.bf16.mxu0 0
          %499 = vmatpush1.bf16.xpose.msra.mxu0 %v479
          %500 = vmatprep.subr.bf16.mxu0 0
          %501 = vmatpush1.bf16.xpose.msra.mxu0 %v482
          %502 = vmatprep.subr.bf16.mxu0 0
          %503 = vmatpush1.bf16.xpose.msra.mxu0 %v485
          %504 = vmatprep.subr.bf16.mxu0 0
          %505 = vmatpush1.bf16.xpose.msra.mxu0 %v488
          %506 = vmatprep.subr.bf16.mxu0 0
          %507 = vmatpush1.bf16.xpose.msra.mxu0 0
          %508 = vmatprep.subr.bf16.mxu0 0
          %509 = vmatpush1.bf16.xpose.msra.mxu0 0
          %510 = vmatprep.subr.bf16.mxu0 0
          %511 = vmatpush1.bf16.xpose.msra.mxu0 0
          %512 = vmatprep.subr.bf16.mxu0 0
          %513 = vmatpush1.bf16.xpose.msra.mxu0 0
          %514 = vmatprep.subr.bf16.mxu0 0
          %515 = vmatpush1.bf16.xpose.msra.mxu0 0
          %516 = vmatprep.subr.bf16.mxu0 0
          %517 = vmatpush1.bf16.xpose.msra.mxu0 0
          %518 = vmatprep.subr.bf16.mxu0 0
          %519 = vmatpush1.bf16.xpose.msra.mxu0 0
          %520 = vmatprep.subr.bf16.mxu0 0
          %521 = vmatpush1.bf16.xpose.msra.mxu0 0
          %522 = vmatprep.mubr.bf16.mxu0 0
          %523 = vmatmul.mubr.bf16.gmra.mrb[0].mxu0 %v461
          %v524 = vpop.f32.mrb[0].mxu0
          %v525 = vadd.f32 0.0, %v524
          %v526 = vpop.f32.mrb[0].mxu0
          %v527 = vpop.f32.mrb[0].mxu0
          %v528 = vadd.f32 0.0, %v527
          %v529 = vpop.f32.mrb[0].mxu0
          %530 = vmatprep.mubr.bf16.mxu0 0
          %531 = vmatmul.mubr.bf16.gmra.mrb[0].mxu0 %v464
          %v532 = vpop.f32.mrb[0].mxu0
          %v533 = vadd.f32 0.0, %v532
          %v534 = vpop.f32.mrb[0].mxu0
          %v535 = vpop.f32.mrb[0].mxu0
          %v536 = vadd.f32 0.0, %v535
          %v537 = vpop.f32.mrb[0].mxu0
          %538 = vdwg.mxu0
          %539 = vst [vmem:[#allocation2] sm:$0xff] %v525
          %540 = vst [vmem:[#allocation2 + $0x8] sm:$0xff] %v528
          %541 = vst [vmem:[#allocation2 + $0x10] sm:$0xff] %v533
          %542 = vst [vmem:[#allocation2 + $0x18] sm:$0xff] %v536
        $region60: #{similarity_forward.1} parent=55 // pred_fallthru
          _
        %v543 = vld [vmem:[%s3] sm:$0xf]
        %v544 = vld [vmem:[%s3 + $0x4] sm:$0xf]
        %v545 = vld [vmem:[%s3 + $0x8] sm:$0xf]
        %v546 = vld [vmem:[%s3 + $0xc] sm:$0xf]
        %v547 = vld [vmem:[%s381] sm:$0xf]
        %v548 = vld [vmem:[%s381 + $0x4] sm:$0xf]
        %v549 = vld [vmem:[%s381 + $0x8] sm:$0xf]
        %v550 = vld [vmem:[%s381 + $0xc] sm:$0xf]
        %v551 = vld [vmem:[%s381 + $0x10] sm:$0xf]
        %v552 = vld [vmem:[%s381 + $0x14] sm:$0xf]
        %v553 = vld [vmem:[%s381 + $0x18] sm:$0xf]
        %v554 = vld [vmem:[%s381 + $0x1c] sm:$0xf]
        %v555 = vld [vmem:[%s381 + $0x20] sm:$0xf]
        %v556 = vld [vmem:[%s381 + $0x24] sm:$0xf]
        %v557 = vld [vmem:[%s381 + $0x28] sm:$0xf]
        %v558 = vld [vmem:[%s381 + $0x2c] sm:$0xf]
        %v559 = vld [vmem:[%s381 + $0x30] sm:$0xf]
        %v560 = vld [vmem:[%s381 + $0x34] sm:$0xf]
        %v561 = vld [vmem:[%s381 + $0x38] sm:$0xf]
        %v562 = vld [vmem:[%s381 + $0x3c] sm:$0xf]
        %v567 = vunpack.c.l.b16 %v543
        %v568 = vunpack.c.l.b16 %v544
        %v569 = vunpack.c.l.b16 %v545
        %v570 = vunpack.c.l.b16 %v546
        %v571 = vpack.c.b16 %v568, %v567
        %v572 = vpack.c.b16 %v570, %v569
        %v589 = vunpack.c.l.b16 %v547
        %v590 = vunpack.c.l.b16 %v548
        %v591 = vunpack.c.l.b16 %v549
        %v592 = vunpack.c.l.b16 %v550
        %v593 = vunpack.c.l.b16 %v551
        %v594 = vunpack.c.l.b16 %v552
        %v595 = vunpack.c.l.b16 %v553
        %v596 = vunpack.c.l.b16 %v554
        %v597 = vunpack.c.l.b16 %v555
        %v598 = vunpack.c.l.b16 %v556
        %v599 = vunpack.c.l.b16 %v557
        %v600 = vunpack.c.l.b16 %v558
        %v601 = vunpack.c.l.b16 %v559
        %v602 = vunpack.c.l.b16 %v560
        %v603 = vunpack.c.l.b16 %v561
        %v604 = vunpack.c.l.b16 %v562
        %v605 = vpack.c.b16 %v590, %v589
        %v606 = vpack.c.b16 %v592, %v591
        %v607 = vpack.c.b16 %v594, %v593
        %v608 = vpack.c.b16 %v596, %v595
        %v609 = vpack.c.b16 %v598, %v597
        %v610 = vpack.c.b16 %v600, %v599
        %v611 = vpack.c.b16 %v602, %v601
        %v612 = vpack.c.b16 %v604, %v603
        %vm613 = vcmask 261120
        %v615 = vsel %vm613, %v571, 0
        %v618 = vsel %vm613, %v572, 0
        %v621 = vsel %vm613, %v605, 0
        %v624 = vsel %vm613, %v606, 0
        %v627 = vsel %vm613, %v607, 0
        %v630 = vsel %vm613, %v608, 0
        %v633 = vsel %vm613, %v609, 0
        %v636 = vsel %vm613, %v610, 0
        %v639 = vsel %vm613, %v611, 0
        %v642 = vsel %vm613, %v612, 0
        %644 = vmatprep.subr.bf16.mxu0 0
        %645 = vmatpush1.bf16.xpose.msra.mxu0 %v621
        %646 = vmatprep.subr.bf16.mxu0 0
        %647 = vmatpush1.bf16.xpose.msra.mxu0 %v624
        %648 = vmatprep.subr.bf16.mxu0 0
        %649 = vmatpush1.bf16.xpose.msra.mxu0 %v627
        %650 = vmatprep.subr.bf16.mxu0 0
        %651 = vmatpush1.bf16.xpose.msra.mxu0 %v630
        %652 = vmatprep.subr.bf16.mxu0 0
        %653 = vmatpush1.bf16.xpose.msra.mxu0 %v633
        %654 = vmatprep.subr.bf16.mxu0 0
        %655 = vmatpush1.bf16.xpose.msra.mxu0 %v636
        %656 = vmatprep.subr.bf16.mxu0 0
        %657 = vmatpush1.bf16.xpose.msra.mxu0 %v639
        %658 = vmatprep.subr.bf16.mxu0 0
        %659 = vmatpush1.bf16.xpose.msra.mxu0 %v642
        %660 = vmatprep.subr.bf16.mxu0 0
        %661 = vmatpush1.bf16.xpose.msra.mxu0 0
        %662 = vmatprep.subr.bf16.mxu0 0
        %663 = vmatpush1.bf16.xpose.msra.mxu0 0
        %664 = vmatprep.subr.bf16.mxu0 0
        %665 = vmatpush1.bf16.xpose.msra.mxu0 0
        %666 = vmatprep.subr.bf16.mxu0 0
        %667 = vmatpush1.bf16.xpose.msra.mxu0 0
        %668 = vmatprep.subr.bf16.mxu0 0
        %669 = vmatpush1.bf16.xpose.msra.mxu0 0
        %670 = vmatprep.subr.bf16.mxu0 0
        %671 = vmatpush1.bf16.xpose.msra.mxu0 0
        %672 = vmatprep.subr.bf16.mxu0 0
        %673 = vmatpush1.bf16.xpose.msra.mxu0 0
        %674 = vmatprep.subr.bf16.mxu0 0
        %675 = vmatpush1.bf16.xpose.msra.mxu0 0
        %676 = vmatprep.mubr.bf16.mxu0 0
        %677 = vmatmul.mubr.bf16.gmra.mrb[0].mxu0 %v615
        %v678 = vpop.f32.mrb[0].mxu0
        %v679 = vadd.f32 0.0, %v678
        %v680 = vpop.f32.mrb[0].mxu0
        %v681 = vpop.f32.mrb[0].mxu0
        %v682 = vadd.f32 0.0, %v681
        %v683 = vpop.f32.mrb[0].mxu0
        %684 = vmatprep.mubr.bf16.mxu0 0
        %685 = vmatmul.mubr.bf16.gmra.mrb[0].mxu0 %v618
        %v686 = vpop.f32.mrb[0].mxu0
        %v687 = vadd.f32 0.0, %v686
        %v688 = vpop.f32.mrb[0].mxu0
        %v689 = vpop.f32.mrb[0].mxu0
        %v690 = vadd.f32 0.0, %v689
        %v691 = vpop.f32.mrb[0].mxu0
        %692 = vdwg.mxu0
        %v693 = vld [vmem:[#allocation2] sm:$0xff]
        %v694 = vld [vmem:[#allocation2 + $0x8] sm:$0xff]
        %v695 = vld [vmem:[#allocation2 + $0x10] sm:$0xff]
        %v696 = vld [vmem:[#allocation2 + $0x18] sm:$0xff]
        %v697 = vadd.f32 %v693, %v679
        %v698 = vadd.f32 %v694, %v682
        %v699 = vadd.f32 %v695, %v687
        %v700 = vadd.f32 %v696, %v690
        %v701 = vld [vmem:[%s4] sm:$0xff]
        %v702 = vld [vmem:[%s4 + $0x8] sm:$0xff]
        %v703 = vld [vmem:[%s4 + $0x10] sm:$0xff]
        %v704 = vld [vmem:[%s4 + $0x18] sm:$0xff]
        %706 = vset.pattern.permute.xlu0 0
        %707 = vperm.xlu0 %706, %v701
        %v708 = vpop.permute.xlu0 %707
        %711 = vset.pattern.permute.xlu0 0
        %712 = vperm.xlu0 %711, %v702
        %v713 = vpop.permute.xlu0 %712
        %716 = vset.pattern.permute.xlu0 0
        %717 = vperm.xlu0 %716, %v703
        %v718 = vpop.permute.xlu0 %717
        %721 = vset.pattern.permute.xlu0 0
        %722 = vperm.xlu0 %721, %v704
        %v723 = vpop.permute.xlu0 %722
        %v725 = vadd.f32 %v697, %v708
        %v726 = vadd.f32 %v698, %v713
        %v727 = vadd.f32 %v699, %v718
        %v728 = vadd.f32 %v700, %v723
        %v729 = vtanh.pop %v725
        %v730 = vtanh.pop %v726
        %v731 = vtanh.pop %v727
        %v732 = vtanh.pop %v728
        %v733 = vld [vmem:[%s5] sm:$0xf]
        %v734 = vld [vmem:[%s5 + $0x4] sm:$0xf]
        %v735 = vpack.c.bf16 %v730, %v729
        %v736 = vpack.c.bf16 %v732, %v731
        %v737 = vld [vmem:[%s6] sm:$0xff]
        %v738 = vld [vmem:[%s6 + $0x8] sm:$0xff]
        %740 = vset.pattern.permute.xlu0 0
        %741 = vperm.xlu0 %740, %v737
        %v742 = vpop.permute.xlu0 %741
        %745 = vset.pattern.permute.xlu0 0
        %746 = vperm.xlu0 %745, %v738
        %v747 = vpop.permute.xlu0 %746
        %v751 = vunpack.c.l.b16 %v733
        %v752 = vunpack.c.l.b16 %v734
        %v753 = vpack.c.b16 %v752, %v751
        %v755 = vsel %vm613, %v753, 0
        %757 = vmatprep.subr.bf16.mxu0 0
        %758 = vmatpush1.bf16.msra.mxu0 %v735
        %759 = vmatprep.subr.bf16.mxu0 0
        %760 = vmatpush1.bf16.msra.mxu0 %v736
        %761 = vmatprep.subr.bf16.mxu0 0
        %762 = vmatpush1.bf16.msra.mxu0 0
        %763 = vmatprep.subr.bf16.mxu0 0
        %764 = vmatpush1.bf16.msra.mxu0 0
        %765 = vmatprep.subr.bf16.mxu0 0
        %766 = vmatpush1.bf16.msra.mxu0 0
        %767 = vmatprep.subr.bf16.mxu0 0
        %768 = vmatpush1.bf16.msra.mxu0 0
        %769 = vmatprep.subr.bf16.mxu0 0
        %770 = vmatpush1.bf16.msra.mxu0 0
        %771 = vmatprep.subr.bf16.mxu0 0
        %772 = vmatpush1.bf16.msra.mxu0 0
        %773 = vmatprep.subr.bf16.mxu0 0
        %774 = vmatpush1.bf16.msra.mxu0 0
        %775 = vmatprep.subr.bf16.mxu0 0
        %776 = vmatpush1.bf16.msra.mxu0 0
        %777 = vmatprep.subr.bf16.mxu0 0
        %778 = vmatpush1.bf16.msra.mxu0 0
        %779 = vmatprep.subr.bf16.mxu0 0
        %780 = vmatpush1.bf16.msra.mxu0 0
        %781 = vmatprep.subr.bf16.mxu0 0
        %782 = vmatpush1.bf16.msra.mxu0 0
        %783 = vmatprep.subr.bf16.mxu0 0
        %784 = vmatpush1.bf16.msra.mxu0 0
        %785 = vmatprep.subr.bf16.mxu0 0
        %786 = vmatpush1.bf16.msra.mxu0 0
        %787 = vmatprep.subr.bf16.mxu0 0
        %788 = vmatpush1.bf16.msra.mxu0 0
        %789 = vmatprep.mubr.bf16.mxu0 0
        %790 = vmatmul.mubr.bf16.gmra.mrb[0].mxu0 %v755
        %v791 = vpop.f32.mrb[0].mxu0
        %v792 = vadd.f32 %v742, %v791
        %v793 = vpop.f32.mrb[0].mxu0
        %v794 = vpop.f32.mrb[0].mxu0
        %v795 = vadd.f32 %v747, %v794
        %v796 = vpop.f32.mrb[0].mxu0
        %797 = vdwg.mxu0
        %v798 = vtanh.pop %v792
        %v799 = vtanh.pop %v795
        %v800 = vld [vmem:[%s7] sm:$0xff]
        %v801 = vld [vmem:[%s7 + $0x8] sm:$0xff]
        %803 = vset.pattern.permute.xlu0 0
        %804 = vperm.xlu0 %803, %v800
        %v805 = vpop.permute.xlu0 %804
        %808 = vset.pattern.permute.xlu0 0
        %809 = vperm.xlu0 %808, %v801
        %v810 = vpop.permute.xlu0 %809
        %v812 = vmul.f32 %v798, %v805
        %v813 = vmul.f32 %v799, %v810
        %v814 = vadd.f32 %v812, %v813
        %v815 = vrot.slane %v814, 4
        %v816 = vadd.f32 %v814, %v815
        %v817 = vrot.slane %v816, 2
        %v818 = vadd.f32 %v816, %v817
        %v819 = vrot.slane %v818, 1
        %v820 = vadd.f32 %v818, %v819
        %s821 = sld [smem:[#allocation3]]
        %v822 = vstv %s821
        %v823 = vadd.f32 %v820, %v822
        %v824 = vxor.u32 %v823, 2147483648
        %v825 = vmul.f32 %v824, 1.442695
        %v826 = vpow.pop %v825
        %v827 = vadd.f32 %v826, 1.0
        %v828 = vrcp.pop %v827
        %v829 = vmul.f32 1.0, %v828
        %830 = vst [vmem:[%s366] sm:$0x1] %v829
        %s831 = sand.u32 %s247, 1
        %s832 = scalar_lea.sflag [#allocation5], %s831
        %s833 = sand.u32 %s247, 1
        %s834 = scalar_lea.vmem [#allocation4], %s833
        // Predicated region
        $region61: #{similarity_forward.1} parent=55 // pred_check
          %p835 = pneg %p257
        $region62: #{similarity_forward.1} parent=55 // pred_check_branch
          %837 = sbr.rel (%p835) target = $region64
        $region63: #{similarity_forward.1} parent=55 // pred_region
          %s838 = sadd.s32 %s29, %s28
          %s840 = ssub.s32 16, 16
          %841 = vsyncadd %s832, %s840
          %s842 = smul.addr %s838, 16
          %s843 = scalar_lea.hbm %s9, %s842
          %s845 = sshll.u32 %s834, 4
          %s846 = int_to_ptr.vmem [resolvable:$true] %s845
          %848 = dma.vmem_to_hbm [thread:$0]  %s846, 16, %s843, %s832
        $region64: #{similarity_forward.1} parent=55 // pred_fallthru
          _
      $region56: #{similarity_forward.1} parent=5 // pred_fallthru
        _
      %p849 = scmp.le.s32.totalorder 2, %s19
      // Predicated region
      $region65: #{similarity_forward.1} parent=5 // pred_check
        %p850 = pneg %p849
      $region66: #{similarity_forward.1} parent=5 // pred_check_branch
        %852 = sbr.rel (%p850) target = $region68
      $region67: #{similarity_forward.1} parent=5 // pred_region
        %s853 = ssub.s32 %s19, 2
        // Predicated region
        $region69: #{similarity_forward.1} parent=67 // pred_check
          %p854 = pneg %p263
        $region70: #{similarity_forward.1} parent=67 // pred_check_branch
          %856 = sbr.rel (%p854) target = $region72
        $region71: #{similarity_forward.1} parent=67 // pred_region
          %s857 = sand.u32 %s248, 1
          %s858 = scalar_lea.sflag [#allocation5], %s857
          %s859 = sand.u32 %s248, 1
          %s860 = scalar_lea.vmem [#allocation4], %s859
          %861 = dma.done %s858, 16
        $region72: #{similarity_forward.1} parent=67 // pred_fallthru
          _
      $region68: #{similarity_forward.1} parent=5 // pred_fallthru
        _
    $region6: #{similarity_forward.1} parent=1 // loop_footer
      %s23 = sadd.s32 1, %s19
    $region7: #{similarity_forward.1} parent=1 // loop_footer_branch
      %18 = sbr.rel target = $region3
    $region8: #{similarity_forward.1} parent=1 // loop_exit
      _
    %862 = vsyncpa [#allocation5], 1
    %s863 = scalar_lea.sflag [#allocation5], 1
    %864 = vsyncpa %s863, 1

</llo_original>
